<compile_context>
chip_gen: v7x
topology: tpu7x:2x2x1
jax: 0.10.0
libtpu: 0.0.40
codegen_flags: <defaults>
</compile_context>

<pallas_src>
import math

import jax
import jax.numpy as jnp
from jax.experimental import pallas as pl
from jax.experimental.pallas import tpu as pltpu

_LANE = 128
_MIN_SPLIT_BYTES = 512 * 1024  # below this, a single grid step is fine everywhere


def _chip_params():
    """Return (target_block_bytes, vmem_limit_bytes, dual_tc) for this TPU gen.

    v7x-class (<=64 MiB VMEM, ~3.2 TB/s HBM, 2 TCs): 8 MiB blocks, 40 MiB scoped
    VMEM (4 double-buffered blocks = 32 MiB + compiler headroom, < 64 MiB phys).
    v5e/v6e (128 MiB VMEM, 0.8-1.4 TB/s HBM, 1 TC): 4 MiB blocks, 32 MiB scoped.
    """
    vmem_bytes = 128 * 1024 * 1024
    try:
        vmem_bytes = int(pltpu.get_tpu_info().vmem_capacity_bytes)
    except Exception:
        # Interpret mode / unexpected runtime: fall back to v5e/v6e sizing.
        pass
    if vmem_bytes <= 64 * 1024 * 1024:
        return 8 * 1024 * 1024, 40 * 1024 * 1024, True
    return 4 * 1024 * 1024, 32 * 1024 * 1024, False


def _flatten_copy_kernel(x_ref, o_ref):
    # Identity copy of the current (tile_r, cols) block.
    o_ref[...] = x_ref[...]


def _largest_divisor_leq(n, cap):
    for cand in range(min(n, cap), 0, -1):
        if n % cand == 0:
            return cand
    return 1


def flatten_pallas(x: jax.Array, *, zero_copy: bool = False) -> jax.Array:
    """Equivalent of torch's x.view(x.size(0), -1)."""
    b = x.shape[0]
    f = math.prod(x.shape[1:]) if x.ndim > 1 else 1

    if zero_copy:
        # Metadata-only fast path (the 100% win when a kernel isn't mandated).
        return jnp.reshape(x, (b, f))

    total = b * f
    itemsize = jnp.dtype(x.dtype).itemsize
    # Sublane-dense multiple: 8 for f32, 16 for bf16, 32 for int8/fp8.
    sub = max(8, 32 // itemsize)
    target_block, vmem_limit, dual_tc = _chip_params()

    # --- Lane-dense copy layout -------------------------------------------
    # Flat buffer viewed as (rows, cols): cols a multiple of 128 so every store
    # is an unmasked full-lane vst and every row tile is one contiguous HBM
    # chunk.  Ragged totals get padded to a lane multiple (one cheap pass)
    # rather than a lane-masked copy.
    total_padded = pl.cdiv(total, _LANE) * _LANE
    total_bytes = total_padded * itemsize

    flat = jnp.reshape(x, (total,))
    if total_padded != total:
        flat = jnp.pad(flat, (0, total_padded - total))

    m = total_padded // _LANE  # number of 128-lane rows in the flat view
    # Largest cols such that a minimal (sub, cols) block still fits the target.
    d_cap = max(1, target_block // (sub * _LANE * itemsize))
    if dual_tc and total_bytes >= _MIN_SPLIT_BYTES and m >= 2 * sub:
        # Keep rows >= 2*sub so the grid can always be split across the 2 TCs.
        d_cap = max(1, min(d_cap, m // (2 * sub)))
    d = _largest_divisor_leq(m, d_cap)
    cols = d * _LANE
    rows = m // d

    if rows <= sub:
        tile_r = rows  # full extent along sublanes: always legal
    else:
        tile_r = (target_block // (cols * itemsize)) // sub * sub
        tile_r = max(sub, min(tile_r, (rows // sub) * sub))
        if dual_tc and total_bytes >= _MIN_SPLIT_BYTES and pl.cdiv(rows, tile_r) < 2:
            # Give each of v7x's two TensorCores at least one block.
            half = (rows + 1) // 2
            tile_r = max(sub, pl.cdiv(half, sub) * sub)

    copy_shape = (rows, cols)
    block = (tile_r, cols)
    grid = (pl.cdiv(rows, tile_r),)

    # Metadata-only, row-major re-view of the (padded) flat buffer.
    x_copy = jnp.reshape(flat, copy_shape)

    out = pl.pallas_call(
        _flatten_copy_kernel,
        out_shape=jax.ShapeDtypeStruct(copy_shape, x.dtype),
        grid_spec=pltpu.PrefetchScalarGridSpec(
            num_scalar_prefetch=0,
            grid=grid,
            in_specs=[pl.BlockSpec(block, lambda i: (i, 0))],
            out_specs=pl.BlockSpec(block, lambda i: (i, 0)),
        ),
        compiler_params=pltpu.CompilerParams(
            dimension_semantics=("parallel",),  # shard grid across v7x's 2 TCs
            vmem_limit_bytes=vmem_limit,        # 4 double-buffered blocks + headroom
        ),
    )(x_copy)

    out_flat = jnp.reshape(out, (total_padded,))
    if total_padded != total:
        out_flat = out_flat[:total]
    return jnp.reshape(out_flat, (b, f))


def _check(x):
    out = jax.block_until_ready(flatten_pallas(x))
    ref = jnp.reshape(x, (x.shape[0], -1))
    assert out.shape == ref.shape, (out.shape, ref.shape)
    assert out.dtype == x.dtype
    assert bool(jnp.array_equal(out, ref))


if __name__ == "__main__":
    key = jax.random.PRNGKey(0)
    k1, k2, k3 = jax.random.split(key, 3)

    # Primary test: small NCHW input consistent with a conv-style feature map.
    x = jax.random.normal(key, (2, 4, 16, 16), dtype=jnp.float32)
    _check(x)

    # Multi-block grid path (several MiB-scale blocks, >=2 grid steps).
    _check(jax.random.normal(k1, (32, 64, 32, 32), dtype=jnp.float32))

    # Non-lane-aligned feature count exercises the pad + slice route.
    _check(jax.random.normal(k2, (2, 3, 5, 7), dtype=jnp.float32))

    # bf16 exercises the sublane multiple of 16.
    _check(jax.random.normal(k3, (4, 8, 16, 16), dtype=jnp.bfloat16))

    # Zero-copy fast path (no kernel) still matches.
    zc = flatten_pallas(x, zero_copy=True)
    assert bool(jnp.array_equal(zc, jnp.reshape(x, (2, -1))))

    print("KERNEL_OK")
</pallas_src>

<mosaic_0001>
module attributes {stable_mosaic.version = 11 : i64} {
  func.func @_flatten_copy_kernel(%arg0: i32, %arg1: memref<1x2048xf32, #tpu.memory_space<vmem>>, %arg2: memref<1x2048xf32, #tpu.memory_space<vmem>>) attributes {dimension_semantics = [#tpu.dimension_semantics<parallel>], iteration_bounds = array<i64: 1>, scalar_prefetch = 0 : i64, scratch_operands = 0 : i64, tpu.core_type = #tpu.core_type<tc>, window_params = [{transform_indices = @transform_0, window_bounds = array<i64: 1, 2048>}, {transform_indices = @transform_1, window_bounds = array<i64: 1, 2048>}]} {
    %c0 = arith.constant 0 : index
    %c0_0 = arith.constant 0 : index
    %0 = vector.load %arg1[%c0, %c0_0] : memref<1x2048xf32, #tpu.memory_space<vmem>>, vector<1x2048xf32>
    %c0_1 = arith.constant 0 : index
    %c0_2 = arith.constant 0 : index
    %1 = vector.load %arg2[%c0_1, %c0_2] : memref<1x2048xf32, #tpu.memory_space<vmem>>, vector<1x2048xf32>
    tpu.vector_store %arg2[%c0_1, %c0_2], %0 {strides = array<i32>} : memref<1x2048xf32, #tpu.memory_space<vmem>>, vector<1x2048xf32>,
    return
  }
  func.func @transform_0(%arg0: i32) -> (i32, i32) {
    %c0_i32 = arith.constant 0 : i32
    %c0_i32_0 = arith.constant 0 : i32
    return %arg0, %c0_i32 : i32, i32
  }
  func.func @transform_1(%arg0: i32) -> (i32, i32) {
    %c0_i32 = arith.constant 0 : i32
    %c0_i32_0 = arith.constant 0 : i32
    return %arg0, %c0_i32 : i32, i32
  }
}

</mosaic_0001>

<llo_original>
// kernel: tpu_custom_call.1
$region0: #{tpu_custom_call.1}
  #allocation0 [shape = 'u32[]', space=smem, size = 0x4, offset = 0x4, fixed_abs, tag = 'smem constant byte address 0x4 - core index']
  #allocation1 [shape = 'u32[144,128]{1,0:T(1,128)}', space=vmem, size = 0x12000, scoped, tag = 'internal scratch']
  %s0 = inlined_call_operand.hbm [shape: f32[1,2048], index: 0, kind: input, shape index: {}]
  %s1 = inlined_call_operand.hbm [shape: f32[1,2048], index: 1, kind: output, shape index: {}]
  %s2 = sld [smem:[#allocation0]]
  $region18: #{tpu_custom_call.1} parent=0
    _
  %s4 = ssub.s32 1, %s2
  %s5 = scalar_select 0, %s4, %s2
  $region1: #{tpu_custom_call.1} parent=0
    #allocation2 [shape = 'u8[8192]{0}', space=vmem, size = 0x2000, scoped, tag = 'input window, operand 0, single buffered']
    #allocation3 [shape = 's32[1]{0}', space=sflag, size = 0x4, scoped, tag = 'scoped memory for tpu_custom_call.1']
    #allocation4 [shape = 's32[1]{0}', space=sflag, size = 0x4, scoped, tag = 'scoped memory for tpu_custom_call.1']
    #allocation5 [shape = 'u8[8192]{0}', space=vmem, size = 0x2000, scoped, tag = 'output window, operand 0, single buffered']
    %6 = vsyncpa [#allocation3], 0
    %7 = vsyncpa [#allocation4], 0
    // Predicated region
    $region2: #{tpu_custom_call.1} parent=1 // pred_check
      _
    $region3: #{tpu_custom_call.1} parent=1 // pred_check_branch
      %9 = sbr.rel (0) target = $region5
    $region4: #{tpu_custom_call.1} parent=1 // pred_region
      %s11 = ssub.s32 256, 256
      %12 = vsyncadd [#allocation3], %s11
      %s14 = sshll.u32 [#allocation2], 4
      %s15 = int_to_ptr.vmem [resolvable:$true] %s14
      %17 = dma.hbm_to_vmem [thread:$0]  %s0, 256, %s15, [#allocation3]
    $region5: #{tpu_custom_call.1} parent=1 // pred_fallthru
      _
    // Predicated region
    $region6: #{tpu_custom_call.1} parent=1 // pred_check
      _
    $region7: #{tpu_custom_call.1} parent=1 // pred_check_branch
      %19 = sbr.rel (0) target = $region9
    $region8: #{tpu_custom_call.1} parent=1 // pred_region
      %20 = dma.done [#allocation3], 256
    $region9: #{tpu_custom_call.1} parent=1 // pred_fallthru
      _
    %v21 = vld [vmem:[#allocation2] sm:$0xff]
    %v22 = vld [vmem:[#allocation2 + $0x8] sm:$0xff]
    %23 = vst [vmem:[#allocation5] sm:$0xff] %v21
    %24 = vst [vmem:[#allocation5 + $0x8] sm:$0xff] %v22
    // Predicated region
    $region10: #{tpu_custom_call.1} parent=1 // pred_check
      _
    $region11: #{tpu_custom_call.1} parent=1 // pred_check_branch
      %26 = sbr.rel (0) target = $region13
    $region12: #{tpu_custom_call.1} parent=1 // pred_region
      %s28 = ssub.s32 256, 256
      %29 = vsyncadd [#allocation4], %s28
      %s31 = sshll.u32 [#allocation5], 4
      %s32 = int_to_ptr.vmem [resolvable:$true] %s31
      %34 = dma.vmem_to_hbm [thread:$0]  %s32, 256, %s1, [#allocation4]
    $region13: #{tpu_custom_call.1} parent=1 // pred_fallthru
      _
    // Predicated region
    $region14: #{tpu_custom_call.1} parent=1 // pred_check
      _
    $region15: #{tpu_custom_call.1} parent=1 // pred_check_branch
      %36 = sbr.rel (0) target = $region17
    $region16: #{tpu_custom_call.1} parent=1 // pred_region
      %37 = dma.done [#allocation4], 256
    $region17: #{tpu_custom_call.1} parent=1 // pred_fallthru
      _
    %38 = vsyncpa [#allocation3], 1
    %39 = vsyncpa [#allocation4], 1

</llo_original>
